<compile_context>
chip_gen: v6e
topology: v6e:2x2x1
jax: 0.10.0
libtpu: 0.0.40
codegen_flags: <defaults>
</compile_context>

<pallas_src>
import math

import jax
import jax.numpy as jnp
from jax.experimental import pallas as pl
from jax.experimental.pallas import tpu as pltpu


def _copy_kernel(x_ref, o_ref):
    # Identity copy of the current (row_tile, lane) block.
    o_ref[...] = x_ref[...]


def _choose_lane(total):
    """Largest lane width (multiple of 128) dividing `total`.

    Prefer a choice that leaves the row count a multiple of 8 so blocks are
    (8k, 128m) vreg-dense.
    """
    cands = (2048, 1024, 512, 256, 128)
    for cand in cands:
        if total % cand == 0 and (total // cand) % 8 == 0:
            return cand
    for cand in cands:
        if total % cand == 0:
            return cand
    return 0


def _choose_row_tile(rows, lane, itemsize, target_block_bytes):
    """Largest multiple-of-8 divisor of `rows` with block <= target bytes."""
    max_r = max(8, (target_block_bytes // (lane * itemsize)) // 8 * 8)
    r = (min(rows, max_r) // 8) * 8
    while r >= 8 and rows % r != 0:
        r -= 8
    if r < 8:
        r = rows  # full leading dim is always a legal block shape
    return r


def reshape_forward(x, outer_shape, *, target_block_bytes=2 << 20):
    """Equivalent of PyTorch Reshape(outer_shape)(x)."""
    b = x.shape[0]
    n = math.prod(x.shape[1:])
    assert n == math.prod(outer_shape), (
        f"cannot view {x.shape} as (batch, {outer_shape})"
    )

    total = b * n
    itemsize = jnp.dtype(x.dtype).itemsize
    lane = _choose_lane(total)

    if lane == 0:
        # Element count not a multiple of 128: a Pallas copy would need a
        # masked tail for zero benefit -- reshape is metadata-only in XLA.
        return x.reshape(b, *outer_shape)

    rows = total // lane
    row_tile = _choose_row_tile(rows, lane, itemsize, target_block_bytes)

    # Metadata-only: lane-dense 2D slab preserving row-major element order.
    x2d = x.reshape(rows, lane)

    out2d = pl.pallas_call(
        _copy_kernel,
        out_shape=jax.ShapeDtypeStruct((rows, lane), x.dtype),
        grid_spec=pltpu.PrefetchScalarGridSpec(
            num_scalar_prefetch=0,
            grid=(rows // row_tile,),
            in_specs=[pl.BlockSpec((row_tile, lane), lambda i: (i, 0))],
            out_specs=pl.BlockSpec((row_tile, lane), lambda i: (i, 0)),
        ),
        compiler_params=pltpu.CompilerParams(
            dimension_semantics=("parallel",),
        ),
        # Donate the input buffer: the identity copy must not double HBM use.
        input_output_aliases={0: 0},
        cost_estimate=pl.CostEstimate(
            flops=0,
            transcendentals=0,
            bytes_accessed=2 * total * itemsize,
        ),
    )(x2d)

    # Metadata-only final view to (batch, *outer_shape).
    return out2d.reshape(b, *outer_shape)


if __name__ == "__main__":
    key = jax.random.PRNGKey(0)
    # NCHW input, as the PyTorch module would receive from a conv stack.
    x = jax.random.normal(key, (2, 4, 16, 16), dtype=jnp.float32)

    # Reshape(outer_shape=(4, 256)) : (2, 4, 16, 16) -> (2, 4, 256)
    outer_shape = (4, 256)

    out = reshape_forward(x, outer_shape)
    out = jax.block_until_ready(out)

    # Reference: plain JAX reshape (same semantics as torch .view on a
    # contiguous tensor).
    ref = x.reshape(x.shape[0], *outer_shape)
    assert out.shape == (2, 4, 256), out.shape
    assert out.dtype == x.dtype
    assert jnp.array_equal(out, ref), "Pallas reshape copy mismatch"

    print("KERNEL_OK")
</pallas_src>

<mosaic_0001>
module attributes {stable_mosaic.version = 11 : i64} {
  func.func @_copy_kernel(%arg0: i32, %arg1: memref<8x256xf32, #tpu.memory_space<vmem>>, %arg2: memref<8x256xf32, #tpu.memory_space<vmem>>) attributes {dimension_semantics = [#tpu.dimension_semantics<parallel>], iteration_bounds = array<i64: 1>, scalar_prefetch = 0 : i64, scratch_operands = 0 : i64, tpu.core_type = #tpu.core_type<tc>, window_params = [{transform_indices = @transform_0, window_bounds = array<i64: 8, 256>}, {transform_indices = @transform_1, window_bounds = array<i64: 8, 256>}]} {
    %c0 = arith.constant 0 : index
    %c0_0 = arith.constant 0 : index
    %0 = vector.load %arg1[%c0, %c0_0] : memref<8x256xf32, #tpu.memory_space<vmem>>, vector<8x256xf32>
    %c0_1 = arith.constant 0 : index
    %c0_2 = arith.constant 0 : index
    %1 = vector.load %arg2[%c0_1, %c0_2] : memref<8x256xf32, #tpu.memory_space<vmem>>, vector<8x256xf32>
    tpu.vector_store %arg2[%c0_1, %c0_2], %0 {strides = array<i32>} : memref<8x256xf32, #tpu.memory_space<vmem>>, vector<8x256xf32>,
    return
  }
  func.func @transform_0(%arg0: i32) -> (i32, i32) {
    %c0_i32 = arith.constant 0 : i32
    %c0_i32_0 = arith.constant 0 : i32
    return %arg0, %c0_i32 : i32, i32
  }
  func.func @transform_1(%arg0: i32) -> (i32, i32) {
    %c0_i32 = arith.constant 0 : i32
    %c0_i32_0 = arith.constant 0 : i32
    return %arg0, %c0_i32 : i32, i32
  }
}

</mosaic_0001>

<llo_original>
// kernel: tpu_custom_call.1
$region0: #{tpu_custom_call.1}
  #allocation0 [shape = 'u32[]', space=smem, size = 0x4, offset = 0x4, fixed_abs, tag = 'smem constant byte address 0x4 - core index']
  #allocation1 [shape = 'u32[144,128]{1,0:T(1,128)}', space=vmem, size = 0x12000, scoped, tag = 'internal scratch']
  %s0 = inlined_call_operand.hbm [shape: f32[8,256], index: 0, kind: input, shape index: {}, may-alias: {0,1}]
  %s1 = inlined_call_operand.hbm [shape: f32[8,256], index: 1, kind: output, shape index: {}, may-alias: {0,1}]
  %s2 = sld [smem:[#allocation0]]
  $region18: #{tpu_custom_call.1} parent=0
    _
  %s4 = ssub.s32 1, %s2
  %s5 = scalar_select 0, %s4, %s2
  $region1: #{tpu_custom_call.1} parent=0
    #allocation2 [shape = 'u8[8192]{0}', space=vmem, size = 0x2000, scoped, tag = 'input window, operand 0, single buffered']
    #allocation3 [shape = 's32[1]{0}', space=sflag, size = 0x4, scoped, tag = 'scoped memory for tpu_custom_call.1']
    #allocation4 [shape = 's32[1]{0}', space=sflag, size = 0x4, scoped, tag = 'scoped memory for tpu_custom_call.1']
    #allocation5 [shape = 'u8[8192]{0}', space=vmem, size = 0x2000, scoped, tag = 'output window, operand 0, single buffered']
    %6 = vsyncpa [#allocation3], 0
    %7 = vsyncpa [#allocation4], 0
    // Predicated region
    $region2: #{tpu_custom_call.1} parent=1 // pred_check
      _
    $region3: #{tpu_custom_call.1} parent=1 // pred_check_branch
      %9 = sbr.rel (0) target = $region5
    $region4: #{tpu_custom_call.1} parent=1 // pred_region
      %s11 = ssub.s32 256, 256
      %12 = vsyncadd [#allocation3], %s11
      %s14 = sshll.u32 [#allocation2], 4
      %s15 = int_to_ptr.vmem [resolvable:$true] %s14
      %17 = dma.hbm_to_vmem [thread:$0]  %s0, 256, %s15, [#allocation3]
    $region5: #{tpu_custom_call.1} parent=1 // pred_fallthru
      _
    // Predicated region
    $region6: #{tpu_custom_call.1} parent=1 // pred_check
      _
    $region7: #{tpu_custom_call.1} parent=1 // pred_check_branch
      %19 = sbr.rel (0) target = $region9
    $region8: #{tpu_custom_call.1} parent=1 // pred_region
      %20 = dma.done [#allocation3], 256
    $region9: #{tpu_custom_call.1} parent=1 // pred_fallthru
      _
    %v21 = vld [vmem:[#allocation2] sm:$0xff]
    %v22 = vld [vmem:[#allocation2 + $0x8] sm:$0xff]
    %23 = vst [vmem:[#allocation5] sm:$0xff] %v21
    %24 = vst [vmem:[#allocation5 + $0x8] sm:$0xff] %v22
    // Predicated region
    $region10: #{tpu_custom_call.1} parent=1 // pred_check
      _
    $region11: #{tpu_custom_call.1} parent=1 // pred_check_branch
      %26 = sbr.rel (0) target = $region13
    $region12: #{tpu_custom_call.1} parent=1 // pred_region
      %s28 = ssub.s32 256, 256
      %29 = vsyncadd [#allocation4], %s28
      %s31 = sshll.u32 [#allocation5], 4
      %s32 = int_to_ptr.vmem [resolvable:$true] %s31
      %34 = dma.vmem_to_hbm [thread:$0]  %s32, 256, %s1, [#allocation4]
    $region13: #{tpu_custom_call.1} parent=1 // pred_fallthru
      _
    // Predicated region
    $region14: #{tpu_custom_call.1} parent=1 // pred_check
      _
    $region15: #{tpu_custom_call.1} parent=1 // pred_check_branch
      %36 = sbr.rel (0) target = $region17
    $region16: #{tpu_custom_call.1} parent=1 // pred_region
      %37 = dma.done [#allocation4], 256
    $region17: #{tpu_custom_call.1} parent=1 // pred_fallthru
      _
    %38 = vsyncpa [#allocation3], 1
    %39 = vsyncpa [#allocation4], 1

</llo_original>
